<compile_context>
chip_gen: v6e
topology: v6e:2x2x1
jax: 0.10.0
libtpu: 0.0.40
codegen_flags: <defaults>
</compile_context>

<pallas_src>
import functools

import jax
import jax.numpy as jnp
from jax.experimental import pallas as pl
from jax.experimental.pallas import tpu as pltpu


def _round_up(x, m):
    return ((x + m - 1) // m) * m


def _embed_onehot_kernel(ids_ref, w_ref, out_ref):
    # ids_ref: VMEM (tile_rows, pack) int32 — "global" ids = token_id + p * A
    # w_ref:   VMEM (L, C)           table dtype — kron(I_pack, table), zero-padded
    # out_ref: VMEM (tile_rows, C)   table dtype — pack tokens per 128-lane row
    t, pack = ids_ref.shape
    l = w_ref.shape[0]

    ids = ids_ref[...]                                        # (t, pack) int32
    lane = jax.lax.broadcasted_iota(jnp.int32, (t, l), 1)     # lane index 0..L-1

    # Build the (t, L) one-hot with `pack` broadcast compares (disjoint lane
    # ranges per p because ids already carry the +p*A offset).
    onehot = (lane == ids[:, 0:1]).astype(w_ref.dtype)
    for p in range(1, pack):                                  # static, pack <= 128 // D
        onehot = onehot + (lane == ids[:, p : p + 1]).astype(w_ref.dtype)

    # Single MXU matmul per tile; full-lane, full-vreg store.
    out_ref[...] = jnp.dot(
        onehot, w_ref[...], preferred_element_type=jnp.float32
    ).astype(out_ref.dtype)


@functools.partial(jax.jit, static_argnames=("max_tile_rows",))
def play_card_action_embedding(inputs, table, *, max_tile_rows=512):
    """Pallas equivalent of PlayCardActionEmbedding.forward(inputs)."""
    num_action, embedding_dim = table.shape
    orig_shape = inputs.shape
    itemsize = table.dtype.itemsize

    # ---- wrapper-side preprocessing (fuses into existing XLA ops) ----------
    # Clamp out-of-range ids here (PyTorch nn.Embedding would raise; we stay
    # in-bounds). Padding ids are 0 and their rows are sliced off below.
    ids = jnp.clip(inputs.reshape(-1).astype(jnp.int32), 0, num_action - 1)
    n = ids.shape[0]

    # Pack `pack` consecutive tokens into one 128-lane output row when the
    # block-diagonal weight stays small; otherwise fall back to pack = 1.
    pack = 1
    if embedding_dim < 128 and 128 % embedding_dim == 0:
        cand = 128 // embedding_dim
        w_bytes = (cand * num_action) * (cand * embedding_dim) * itemsize
        if cand * num_action <= 1024 and w_bytes <= (4 << 20):
            pack = cand

    packed_d = pack * embedding_dim
    lane_a = _round_up(pack * num_action, 128)   # one-hot lane width L
    lane_d = _round_up(packed_d, 128)            # output lane width C

    rows = pl.cdiv(n, pack)
    if rows <= max_tile_rows:
        tile_rows = rows                         # single step, exact block
        rows_padded = rows
    else:
        tile_rows = max_tile_rows                # multiple of 8 -> valid tiling
        rows_padded = pl.cdiv(rows, tile_rows) * tile_rows
    n_total = rows_padded * pack
    if n_total != n:
        ids = jnp.pad(ids, (0, n_total - n))

    # Global ids: +p*A selects the p-th block of the block-diagonal weight.
    offs = (jnp.arange(n_total, dtype=jnp.int32) % pack) * num_action
    ids2d = (ids + offs).reshape(rows_padded, pack)

    # Block-diagonal weight: W[p*A + a, p*D + d] = table[a, d]; exact (0/1 *).
    w = jnp.kron(jnp.eye(pack, dtype=table.dtype), table)
    w = jnp.pad(w, ((0, lane_a - pack * num_action), (0, lane_d - packed_d)))

    num_steps = rows_padded // tile_rows
    cost = pl.CostEstimate(
        flops=2 * rows_padded * lane_a * lane_d,
        transcendentals=0,
        bytes_accessed=ids2d.size * 4 + w.size * itemsize
        + rows_padded * lane_d * itemsize,
    )

    out = pl.pallas_call(
        _embed_onehot_kernel,
        out_shape=jax.ShapeDtypeStruct((rows_padded, lane_d), table.dtype),
        grid=(num_steps,),
        in_specs=[
            # per-tile ids block (tiny; no whole-problem SMEM prefetch)
            pl.BlockSpec((tile_rows, pack), lambda i: (i, 0)),
            # block-diagonal table, VMEM resident, same block every step
            pl.BlockSpec((lane_a, lane_d), lambda i: (0, 0)),
        ],
        out_specs=pl.BlockSpec((tile_rows, lane_d), lambda i: (i, 0)),
        compiler_params=pltpu.CompilerParams(
            # multi-step: disjoint outputs -> shard across cores (v7x 2 TCs);
            # single tiny step: avoid megacore split overhead.
            dimension_semantics=("parallel",) if num_steps > 1 else ("arbitrary",),
        ),
        cost_estimate=cost,
    )(ids2d, w)

    if lane_d != packed_d:                       # only if D doesn't divide 128
        out = out[:, :packed_d]
    flat = out.reshape(-1)                       # contiguous -> free reshape
    if flat.shape[0] != n * embedding_dim:
        flat = flat[: n * embedding_dim]         # drop padded rows
    return flat.reshape(*orig_shape, embedding_dim)


if __name__ == "__main__":
    # Module hyperparameters (synthetic, deterministic init).
    num_action = 32
    embedding_dim = 32

    key = jax.random.PRNGKey(0)
    k_table, k_ids = jax.random.split(key)

    # nn.Embedding weight ~ N(0, 1), shape (num_action, embedding_dim)
    table = jax.random.normal(k_table, (num_action, embedding_dim), dtype=jnp.float32)

    # inputs: integer action ids, shape (batch=2, seq=8)
    inputs = jax.random.randint(
        k_ids, (2, 8), minval=0, maxval=num_action, dtype=jnp.int32
    )

    out = play_card_action_embedding(inputs, table)
    out = jax.block_until_ready(out)

    # sanity check against plain JAX gather (same semantics as nn.Embedding)
    ref = jnp.take(table, inputs, axis=0)
    assert out.shape == (2, 8, embedding_dim), out.shape
    assert jnp.allclose(out, ref, atol=1e-6), "mismatch vs reference gather"

    print("KERNEL_OK")
</pallas_src>

<mosaic_0001>
module attributes {stable_mosaic.version = 11 : i64} {
  func.func @_embed_onehot_kernel(%arg0: i32, %arg1: memref<4x4xi32, #tpu.memory_space<vmem>>, %arg2: memref<128x128xf32, #tpu.memory_space<vmem>>, %arg3: memref<4x128xf32, #tpu.memory_space<vmem>>) attributes {dimension_semantics = [#tpu.dimension_semantics<arbitrary>], iteration_bounds = array<i64: 1>, scalar_prefetch = 0 : i64, scratch_operands = 0 : i64, tpu.core_type = #tpu.core_type<tc>, window_params = [{transform_indices = @transform_0, window_bounds = array<i64: 4, 4>}, {pipeline_mode = #tpu.pipeline_mode<synchronous>, transform_indices = @transform_1, window_bounds = array<i64: 128, 128>}, {transform_indices = @transform_2, window_bounds = array<i64: 4, 128>}]} {
    %c0 = arith.constant 0 : index
    %c0_0 = arith.constant 0 : index
    %0 = vector.load %arg1[%c0, %c0_0] : memref<4x4xi32, #tpu.memory_space<vmem>>, vector<4x4xi32>
    %1 = tpu.iota {dimensions = array<i32: 1>} : vector<4x128xi32>
    %2 = vector.extract_strided_slice %0 {offsets = [0, 0], sizes = [4, 1], strides = [1, 1]} : vector<4x4xi32> to vector<4x1xi32>
    %3 = vector.broadcast %2 : vector<4x1xi32> to vector<4x128xi32>
    %4 = arith.cmpi eq, %1, %3 : vector<4x128xi32>
    %5 = arith.extui %4 : vector<4x128xi1> to vector<4x128xi32>
    %6 = arith.sitofp %5 : vector<4x128xi32> to vector<4x128xf32>
    %7 = vector.extract_strided_slice %0 {offsets = [0, 1], sizes = [4, 1], strides = [1, 1]} : vector<4x4xi32> to vector<4x1xi32>
    %8 = vector.broadcast %7 : vector<4x1xi32> to vector<4x128xi32>
    %9 = arith.cmpi eq, %1, %8 : vector<4x128xi32>
    %10 = arith.extui %9 : vector<4x128xi1> to vector<4x128xi32>
    %11 = arith.sitofp %10 : vector<4x128xi32> to vector<4x128xf32>
    %12 = arith.addf %6, %11 : vector<4x128xf32>
    %13 = vector.extract_strided_slice %0 {offsets = [0, 2], sizes = [4, 1], strides = [1, 1]} : vector<4x4xi32> to vector<4x1xi32>
    %14 = vector.broadcast %13 : vector<4x1xi32> to vector<4x128xi32>
    %15 = arith.cmpi eq, %1, %14 : vector<4x128xi32>
    %16 = arith.extui %15 : vector<4x128xi1> to vector<4x128xi32>
    %17 = arith.sitofp %16 : vector<4x128xi32> to vector<4x128xf32>
    %18 = arith.addf %12, %17 : vector<4x128xf32>
    %19 = vector.extract_strided_slice %0 {offsets = [0, 3], sizes = [4, 1], strides = [1, 1]} : vector<4x4xi32> to vector<4x1xi32>
    %20 = vector.broadcast %19 : vector<4x1xi32> to vector<4x128xi32>
    %21 = arith.cmpi eq, %1, %20 : vector<4x128xi32>
    %22 = arith.extui %21 : vector<4x128xi1> to vector<4x128xi32>
    %23 = arith.sitofp %22 : vector<4x128xi32> to vector<4x128xf32>
    %24 = arith.addf %18, %23 : vector<4x128xf32>
    %c0_1 = arith.constant 0 : index
    %c0_2 = arith.constant 0 : index
    %25 = vector.load %arg2[%c0_1, %c0_2] : memref<128x128xf32, #tpu.memory_space<vmem>>, vector<128x128xf32>
    %cst = arith.constant dense<0.000000e+00> : vector<4x128xf32>
    %26 = tpu.matmul %24, %25, %cst {dimension_numbers = #tpu.dot_dimension_numbers<[1], [0], [0], [1], [0, 0, 1, 1], [], []>} : vector<4x128xf32>, vector<128x128xf32>, vector<4x128xf32> -> vector<4x128xf32>
    %c0_3 = arith.constant 0 : index
    %c0_4 = arith.constant 0 : index
    %27 = vector.load %arg3[%c0_3, %c0_4] : memref<4x128xf32, #tpu.memory_space<vmem>>, vector<4x128xf32>
    tpu.vector_store %arg3[%c0_3, %c0_4], %26 {strides = array<i32>} : memref<4x128xf32, #tpu.memory_space<vmem>>, vector<4x128xf32>,
    return
  }
  func.func @transform_0(%arg0: i32) -> (i32, i32) {
    %c0_i32 = arith.constant 0 : i32
    %c0_i32_0 = arith.constant 0 : i32
    return %arg0, %c0_i32 : i32, i32
  }
  func.func @transform_1(%arg0: i32) -> (i32, i32) {
    %c0_i32 = arith.constant 0 : i32
    %c0_i32_0 = arith.constant 0 : i32
    %c0_i32_1 = arith.constant 0 : i32
    return %c0_i32, %c0_i32_0 : i32, i32
  }
  func.func @transform_2(%arg0: i32) -> (i32, i32) {
    %c0_i32 = arith.constant 0 : i32
    %c0_i32_0 = arith.constant 0 : i32
    return %arg0, %c0_i32 : i32, i32
  }
}

</mosaic_0001>

<llo_original>
// kernel: play_card_action_embedding.1
$region0: #{play_card_action_embedding.1}
  #allocation0 [shape = 'u32[]', space=smem, size = 0x4, offset = 0x4, fixed_abs, tag = 'smem constant byte address 0x4 - core index']
  #allocation1 [shape = 'u32[144,128]{1,0:T(1,128)}', space=vmem, size = 0x12000, scoped, tag = 'internal scratch']
  %s0 = inlined_call_operand.vmem [shape: s32[4,4], index: 0, kind: input, shape index: {}]
  %s1 = inlined_call_operand.vmem [shape: f32[128,128], index: 1, kind: input, shape index: {}]
  %s2 = inlined_call_operand.vmem [shape: f32[4,128], index: 2, kind: output, shape index: {}]
  %s3 = sld [smem:[#allocation0]]
  $region18: #{play_card_action_embedding.1} parent=0
    _
  %s5 = ssub.s32 1, %s3
  %s6 = scalar_select 0, %s5, %s3
  // Predicated region
  $region2: #{play_card_action_embedding.1} parent=0 // pred_check
    _
  $region3: #{play_card_action_embedding.1} parent=0 // pred_check_branch
    %8 = sbr.rel (0) target = $region5
  $region4: #{play_card_action_embedding.1} parent=0 // pred_region
    _
  $region5: #{play_card_action_embedding.1} parent=0 // pred_fallthru
    _
  // Predicated region
  $region6: #{play_card_action_embedding.1} parent=0 // pred_check
    _
  $region7: #{play_card_action_embedding.1} parent=0 // pred_check_branch
    %10 = sbr.rel (0) target = $region9
  $region8: #{play_card_action_embedding.1} parent=0 // pred_region
    _
  $region9: #{play_card_action_embedding.1} parent=0 // pred_fallthru
    _
  %v11 = vld [vmem:[%s0] sm:$0xf]
  %v12 = vlaneseq
  %v13 = vand.u32 %v12, 127
  %14 = vset.pattern.permute.xlu0 0
  %15 = vperm.xlu0 %14, %v11
  %v16 = vpop.permute.xlu0 %15
  %vm17 = vcmp.eq.s32.totalorder %v13, %v16
  %v18 = vsel %vm17, 1, 0
  %v19 = vcvt.s32.f32 %v18
  %20 = vset.pattern.permute.xlu0 1
  %21 = vperm.xlu0 %20, %v11
  %v22 = vpop.permute.xlu0 %21
  %vm23 = vcmp.eq.s32.totalorder %v13, %v22
  %v24 = vsel %vm23, 1, 0
  %v25 = vcvt.s32.f32 %v24
  %v26 = vadd.f32 %v19, %v25
  %27 = vset.pattern.permute.xlu0 2
  %28 = vperm.xlu0 %27, %v11
  %v29 = vpop.permute.xlu0 %28
  %vm30 = vcmp.eq.s32.totalorder %v13, %v29
  %v31 = vsel %vm30, 1, 0
  %v32 = vcvt.s32.f32 %v31
  %v33 = vadd.f32 %v26, %v32
  %34 = vset.pattern.permute.xlu0 3
  %35 = vperm.xlu0 %34, %v11
  %v36 = vpop.permute.xlu0 %35
  %vm37 = vcmp.eq.s32.totalorder %v13, %v36
  %v38 = vsel %vm37, 1, 0
  %v39 = vcvt.s32.f32 %v38
  %v40 = vadd.f32 %v33, %v39
  %v41 = vld [vmem:[%s1] sm:$0xff]
  %v42 = vld [vmem:[%s1 + $0x8] sm:$0xff]
  %v43 = vld [vmem:[%s1 + $0x10] sm:$0xff]
  %v44 = vld [vmem:[%s1 + $0x18] sm:$0xff]
  %v45 = vld [vmem:[%s1 + $0x20] sm:$0xff]
  %v46 = vld [vmem:[%s1 + $0x28] sm:$0xff]
  %v47 = vld [vmem:[%s1 + $0x30] sm:$0xff]
  %v48 = vld [vmem:[%s1 + $0x38] sm:$0xff]
  %v49 = vld [vmem:[%s1 + $0x40] sm:$0xff]
  %v50 = vld [vmem:[%s1 + $0x48] sm:$0xff]
  %v51 = vld [vmem:[%s1 + $0x50] sm:$0xff]
  %v52 = vld [vmem:[%s1 + $0x58] sm:$0xff]
  %v53 = vld [vmem:[%s1 + $0x60] sm:$0xff]
  %v54 = vld [vmem:[%s1 + $0x68] sm:$0xff]
  %v55 = vld [vmem:[%s1 + $0x70] sm:$0xff]
  %v56 = vld [vmem:[%s1 + $0x78] sm:$0xff]
  %57 = vmatprep.subr.mxu0 0.0
  %58 = vmatpush1.msra.mxu0 %v56
  %59 = vmatprep.subr.mxu0 0.0
  %60 = vmatpush1.msra.mxu0 %v55
  %61 = vmatprep.subr.mxu0 0.0
  %62 = vmatpush1.msra.mxu0 %v54
  %63 = vmatprep.subr.mxu0 0.0
  %64 = vmatpush1.msra.mxu0 %v53
  %65 = vmatprep.subr.mxu0 0.0
  %66 = vmatpush1.msra.mxu0 %v52
  %67 = vmatprep.subr.mxu0 0.0
  %68 = vmatpush1.msra.mxu0 %v51
  %69 = vmatprep.subr.mxu0 0.0
  %70 = vmatpush1.msra.mxu0 %v50
  %71 = vmatprep.subr.mxu0 0.0
  %72 = vmatpush1.msra.mxu0 %v49
  %73 = vmatprep.subr.mxu0 0.0
  %74 = vmatpush1.msra.mxu0 %v48
  %75 = vmatprep.subr.mxu0 0.0
  %76 = vmatpush1.msra.mxu0 %v47
  %77 = vmatprep.subr.mxu0 0.0
  %78 = vmatpush1.msra.mxu0 %v46
  %79 = vmatprep.subr.mxu0 0.0
  %80 = vmatpush1.msra.mxu0 %v45
  %81 = vmatprep.subr.mxu0 0.0
  %82 = vmatpush1.msra.mxu0 %v44
  %83 = vmatprep.subr.mxu0 0.0
  %84 = vmatpush1.msra.mxu0 %v43
  %85 = vmatprep.subr.mxu0 0.0
  %86 = vmatpush1.msra.mxu0 %v42
  %87 = vmatprep.subr.mxu0 0.0
  %88 = vmatpush1.msra.mxu0 %v41
  %89 = vmatprep.subr.mxu0 0.0
  %90 = vmatpush2.msra.mxu0 0.0
  %91 = vmatprep.subr.mxu0 0.0
  %92 = vmatpush2.msra.mxu0 0.0
  %93 = vmatprep.subr.mxu0 0.0
  %94 = vmatpush2.msra.mxu0 0.0
  %95 = vmatprep.subr.mxu0 0.0
  %96 = vmatpush2.msra.mxu0 0.0
  %97 = vmatprep.subr.mxu0 0.0
  %98 = vmatpush2.msra.mxu0 0.0
  %99 = vmatprep.subr.mxu0 0.0
  %100 = vmatpush2.msra.mxu0 0.0
  %101 = vmatprep.subr.mxu0 0.0
  %102 = vmatpush2.msra.mxu0 0.0
  %103 = vmatprep.subr.mxu0 0.0
  %104 = vmatpush2.msra.mxu0 0.0
  %105 = vmatprep.subr.mxu0 0.0
  %106 = vmatpush2.msra.mxu0 0.0
  %107 = vmatprep.subr.mxu0 0.0
  %108 = vmatpush2.msra.mxu0 0.0
  %109 = vmatprep.subr.mxu0 0.0
  %110 = vmatpush2.msra.mxu0 0.0
  %111 = vmatprep.subr.mxu0 0.0
  %112 = vmatpush2.msra.mxu0 0.0
  %113 = vmatprep.subr.mxu0 0.0
  %114 = vmatpush2.msra.mxu0 0.0
  %115 = vmatprep.subr.mxu0 0.0
  %116 = vmatpush2.msra.mxu0 0.0
  %117 = vmatprep.subr.mxu0 0.0
  %118 = vmatpush2.msra.mxu0 0.0
  %119 = vmatprep.subr.mxu0 0.0
  %120 = vmatpush2.msra.mxu0 0.0
  %121 = vmatprep.mubr.f32.mxu0 0.0
  %122 = vmatmul.mubr.f32.gmra.mxu0 %v40
  %v123 = vpop.f32.mrf.mxu0
  %v124 = vadd.f32 0.0, %v123
  %v125 = vpop.f32.mrf.mxu0
  %126 = vdwg.mxu0
  %127 = vst [vmem:[%s2] sm:$0xf] %v124
  // Predicated region
  $region10: #{play_card_action_embedding.1} parent=0 // pred_check
    _
  $region11: #{play_card_action_embedding.1} parent=0 // pred_check_branch
    %129 = sbr.rel (0) target = $region13
  $region12: #{play_card_action_embedding.1} parent=0 // pred_region
    _
  $region13: #{play_card_action_embedding.1} parent=0 // pred_fallthru
    _
  // Predicated region
  $region14: #{play_card_action_embedding.1} parent=0 // pred_check
    _
  $region15: #{play_card_action_embedding.1} parent=0 // pred_check_branch
    %131 = sbr.rel (0) target = $region17
  $region16: #{play_card_action_embedding.1} parent=0 // pred_region
    _
  $region17: #{play_card_action_embedding.1} parent=0 // pred_fallthru
    _

</llo_original>
